<compile_context>
chip_gen: v7x
topology: tpu7x:2x2x1
jax: 0.10.0
libtpu: 0.0.40
codegen_flags: <defaults>
</compile_context>

<pallas_src>
import math

import numpy as np
import jax
import jax.numpy as jnp
from jax import lax
from jax.experimental import pallas as pl
from jax.experimental.pallas import tpu as pltpu

# ----------------------------------------------------------------------------
# Layout constants
# ----------------------------------------------------------------------------
_LANE = 128                # lane granularity
_MAX_TILE = 1024           # max lanes per grid step (swept knob, mult of 128)
_NODE_IN_ROWS = 16         # pos(1) + backbone x(4)|y(4)|z(4) + pad(3)
_NODE_OUT_ROWS = 64        # pos-embed(16) + 3 x RBF(16)
_EDGE_IN_ROWS = 40         # etype(1)+posd(1)+Xr x/y/z(12)+CAc(3)+Or(9)+Oc(9)+pad(5)
_EDGE_OUT_ROWS = 104       # onehot(8)+pos(16)+dist(64)+quat(4)+direct(12)
_INV_SIGMA = 16.0 / 20.0   # 1 / D_sigma for the RBF

# Constant tables packed into a single (32, 1) slab that is passed as a kernel
# input (Pallas rejects captured array constants inside kernel bodies).
#   rows 0-7  : positional-embedding frequencies
#   rows 8-23 : RBF mus (linspace 0..20, 16 points)
#   rows 24-31: edge-type ids 0..7
_CONST_SLAB = np.zeros((32, 1), np.float32)
_CONST_SLAB[0:8, 0] = np.exp(
    np.arange(0, 16, 2, dtype=np.float32) * (-(math.log(10000.0) / 16.0))
)
_CONST_SLAB[8:24, 0] = np.linspace(0.0, 20.0, 16, dtype=np.float32)
_CONST_SLAB[24:32, 0] = np.arange(8, dtype=np.float32)


# ----------------------------------------------------------------------------
# Pallas kernels (feature-major: [features -> sublanes, nodes/edges -> lanes])
# ----------------------------------------------------------------------------
def _node_kernel(const_ref, in_ref, out_ref):
    # const_ref: (32, 1)  rows 0-7 freq, 8-23 mu
    # in_ref:    (16, T)  rows: 0 pos, 1-4 x(N,CA,C,O), 5-8 y, 9-12 z
    # out_ref:   (64, T)  rows: 0-15 pos-embed, 16-31 RBF(NC), 32-47 RBF(CC),
    #                           48-63 RBF(OC)
    freq = const_ref[0:8, :]          # (8, 1)
    mu = const_ref[8:24, :]           # (16, 1)

    ang = in_ref[0:1, :] * freq       # (8, T)
    out_ref[0:8, :] = jnp.cos(ang)
    out_ref[8:16, :] = jnp.sin(ang)

    # atom - CA, packed (4, T) per component (row 1 of each slab = CA - CA = 0)
    dx = in_ref[1:5, :] - in_ref[2:3, :]
    dy = in_ref[5:9, :] - in_ref[6:7, :]
    dz = in_ref[9:13, :] - in_ref[10:11, :]
    dist = jnp.sqrt(dx * dx + dy * dy + dz * dz + 1e-6)     # (4, T)

    def rbf(d_row):                   # (1, T) -> (16, T)
        z = (d_row - mu) * _INV_SIGMA
        return jnp.exp(-(z * z))

    out_ref[16:32, :] = rbf(dist[0:1, :])    # N  - CA
    out_ref[32:48, :] = rbf(dist[2:3, :])    # C  - CA
    out_ref[48:64, :] = rbf(dist[3:4, :])    # O  - CA


def _edge_kernel(const_ref, in_ref, out_ref):
    # const_ref: (32, 1)  rows 0-7 freq, 8-23 mu, 24-31 type ids
    # in_ref:    (40, T)  rows: 0 etype, 1 posd,
    #                           2-5 Xr_x(N,CA,C,O), 6-9 Xr_y, 10-13 Xr_z,
    #                           14-16 CA_col xyz,
    #                           17-25 O_row (row-major), 26-34 O_col
    # out_ref:   (104, T) rows: 0-7 one-hot, 8-23 pos-embed (masked),
    #                           24-87 4 x RBF(16), 88-91 quaternion,
    #                           92-103 direction features
    freq = const_ref[0:8, :]
    mu = const_ref[8:24, :]
    tids = const_ref[24:32, :]

    etype = in_ref[0:1, :]
    posd = in_ref[1:2, :]

    onehot = (etype == tids).astype(jnp.float32)            # (8, T)
    out_ref[0:8, :] = onehot

    # positional embedding, zeroed for edge types 1, 2, 6, 7 (edge_masking)
    pmask = 1.0 - (onehot[1:2, :] + onehot[2:3, :]
                   + onehot[6:7, :] + onehot[7:8, :])
    ang = posd * freq                                        # (8, T)
    out_ref[8:16, :] = jnp.cos(ang) * pmask
    out_ref[16:24, :] = jnp.sin(ang) * pmask

    # atom_row - CA_col, packed (4, T) per component; reused for RBF + direct
    vx = in_ref[2:6, :] - in_ref[14:15, :]
    vy = in_ref[6:10, :] - in_ref[15:16, :]
    vz = in_ref[10:14, :] - in_ref[16:17, :]
    dist = jnp.sqrt(vx * vx + vy * vy + vz * vz + 1e-6)      # (4, T)

    def rbf(d_row):
        z = (d_row - mu) * _INV_SIGMA
        return jnp.exp(-(z * z))

    out_ref[24:40, :] = rbf(dist[0:1, :])    # N_row  - CA_col
    out_ref[40:56, :] = rbf(dist[1:2, :])    # CA_row - CA_col
    out_ref[56:72, :] = rbf(dist[2:3, :])    # C_row  - CA_col
    out_ref[72:88, :] = rbf(dist[3:4, :])    # O_row  - CA_col

    # quaternion of R = O_row^T @ O_col (flat row-major: o[3k+j] = O[k][j])
    o_r = in_ref[17:26, :]                   # (9, T)
    o_c = in_ref[26:35, :]                   # (9, T)

    prod = o_r * o_c                         # (9, T)
    diag = prod[0:3, :] + prod[3:6, :] + prod[6:9, :]        # (3, T) Rxx,Ryy,Rzz
    trace = diag[0:1, :] + diag[1:2, :] + diag[2:3, :]       # (1, T)
    mag = 0.5 * jnp.sqrt(jnp.abs(1.0 + 2.0 * diag - trace))  # (3, T)

    def R(a, b):                              # R[a, b] as (1, T)
        return (o_r[a:a + 1, :] * o_c[b:b + 1, :]
                + o_r[3 + a:4 + a, :] * o_c[3 + b:4 + b, :]
                + o_r[6 + a:7 + a, :] * o_c[6 + b:7 + b, :])

    asym = jnp.concatenate(
        [R(2, 1) - R(1, 2), R(0, 2) - R(2, 0), R(1, 0) - R(0, 1)], axis=0
    )                                         # (3, T)
    qxyz = jnp.sign(asym) * mag               # (3, T)
    qw = 0.5 * jnp.sqrt(jnp.maximum(1.0 + trace, 0.0))       # (1, T)
    q = jnp.concatenate([qxyz, qw], axis=0)   # (4, T)
    q = q * lax.rsqrt(jnp.sum(q * q, axis=0, keepdims=True) + 1e-24)

    # direction features: normalize(O_col @ (atom_row - CA_col)), packed (4, T)
    d0 = o_c[0:1, :] * vx + o_c[1:2, :] * vy + o_c[2:3, :] * vz
    d1 = o_c[3:4, :] * vx + o_c[4:5, :] * vy + o_c[5:6, :] * vz
    d2 = o_c[6:7, :] * vx + o_c[7:8, :] * vy + o_c[8:9, :] * vz
    dinv = lax.rsqrt(d0 * d0 + d1 * d1 + d2 * d2 + 1e-24)
    d0 = d0 * dinv
    d1 = d1 * dinv
    d2 = d2 * dinv

    # two aligned, unmasked 8-row stores for the quat + direction tail
    out_ref[88:96, :] = jnp.concatenate(
        [q, d0[0:1, :], d1[0:1, :], d2[0:1, :], d0[1:2, :]], axis=0)
    out_ref[96:104, :] = jnp.concatenate(
        [d1[1:2, :], d2[1:2, :],
         d0[2:3, :], d1[2:3, :], d2[2:3, :],
         d0[3:4, :], d1[3:4, :], d2[3:4, :]], axis=0)


# ----------------------------------------------------------------------------
# Tiling / pallas_call helpers
# ----------------------------------------------------------------------------
def _next_pow2(n):
    return 1 if n <= 1 else 1 << (n - 1).bit_length()


def _soft_bucket(n):
    """Smallest m >= n on the {pow2, 1.5*pow2} ladder (1,2,3,4,6,8,12,16,...)."""
    n = max(1, n)
    p = _next_pow2(n)
    q = 3 * (p // 4)
    return q if (p >= 4 and n <= q) else p


def _plan_layout(n):
    """Pick (lane tile, padded col count) for n items mapped to the lane axis.

    Tiles are multiples of 128, capped at _MAX_TILE (VMEM safe on v7x's 64 MiB),
    and the grid has >= 2 steps whenever >1 128-lane chunk is needed so v7x's
    second TensorCore gets work via the "parallel" grid axis.
    """
    chunks = _soft_bucket(-(-max(1, n) // _LANE))
    max_chunks = _MAX_TILE // _LANE
    if chunks <= max_chunks:
        if chunks == 1:
            return _LANE, _LANE
        tile_chunks = (chunks + 1) // 2
        return tile_chunks * _LANE, 2 * tile_chunks * _LANE
    grid = _soft_bucket(-(-chunks // max_chunks))
    return _MAX_TILE, grid * _MAX_TILE


def _fm_pallas_call(kernel, slab, out_rows, tile, *, flops_per_col, transc_per_col):
    in_rows, cols = slab.shape
    grid = (cols // tile,)
    cost = pl.CostEstimate(
        flops=int(flops_per_col) * int(cols),
        transcendentals=int(transc_per_col) * int(cols),
        bytes_accessed=(in_rows + out_rows) * 4 * int(cols) + _CONST_SLAB.size * 4,
    )
    return pl.pallas_call(
        kernel,
        grid=grid,
        in_specs=[
            pl.BlockSpec((32, 1), lambda i: (0, 0)),           # constant tables
            pl.BlockSpec((in_rows, tile), lambda i: (0, i)),   # data slab
        ],
        out_specs=pl.BlockSpec((out_rows, tile), lambda i: (0, i)),
        out_shape=jax.ShapeDtypeStruct((out_rows, cols), jnp.float32),
        compiler_params=pltpu.CompilerParams(dimension_semantics=("parallel",)),
        cost_estimate=cost,
    )(jnp.asarray(_CONST_SLAB), jnp.asarray(slab))


# ----------------------------------------------------------------------------
# Host-side helpers
# ----------------------------------------------------------------------------
def _np_normalize(x, eps=1e-12):
    n = np.linalg.norm(x, axis=-1, keepdims=True)
    return x / np.maximum(n, eps)


class ProteinFeaturePallas:
    """JAX/Pallas port of ProteinFeature.forward."""

    # synthetic deterministic vocabulary indices (VOCAB is external in the repo)
    BOA_IDX, BOH_IDX, BOL_IDX = 1, 2, 3
    AG_SEG, HC_SEG, LC_SEG = 3, 1, 2

    def __init__(self, interface_only):
        self.interface_only = interface_only

    # ----------------------- segments --------------------------------------
    def _construct_segment_ids(self, S):
        glbl = (S == self.BOA_IDX) | (S == self.BOH_IDX) | (S == self.BOL_IDX)
        g = S[glbl]
        g = np.where(
            g == self.BOA_IDX,
            self.AG_SEG,
            np.where(g == self.BOH_IDX, self.HC_SEG, self.LC_SEG),
        ).astype(S.dtype)
        seg = np.zeros_like(S)
        seg[glbl] = g - np.concatenate([np.zeros(1, dtype=S.dtype), g[:-1]])
        segment_ids = np.cumsum(seg)
        ind = np.zeros_like(S)
        ind[glbl] = 1
        segment_mask = np.cumsum(ind)
        segment_idx = np.nonzero(ind)[0]
        return segment_ids, segment_mask, segment_idx

    # ----------------------- edge construction (dynamic shapes) ------------
    def _radial_edges(self, X, src_dst, cutoff):
        if src_dst.shape[0] == 0:
            return np.zeros((2, 0), np.int64)
        d = X[:, 1][src_dst]                       # [M, 2, 3]
        dist = np.linalg.norm(d[:, 0] - d[:, 1], axis=-1)
        sd = src_dst[dist <= cutoff]
        return sd.T

    def _knn_edges(self, X, offs, segment_ids, is_global, top_k=8):
        N = X.shape[0]
        rows, cols = [], []
        B = len(offs)
        for b in range(B):
            start = int(offs[b])
            end = int(offs[b + 1]) if b != B - 1 else N
            Xb = X[start:end, 1, :]
            dX = Xb[None, :, :] - Xb[:, None, :]
            D = np.sqrt((dX ** 2).sum(-1) + 1e-6)
            idx = np.argsort(D, axis=-1)[:, :top_k]
            rows.append(np.repeat(np.arange(Xb.shape[0]), top_k) + start)
            cols.append(idx.reshape(-1) + start)
        row = np.concatenate(rows)
        col = np.concatenate(cols)
        row_seg, col_seg = segment_ids[row], segment_ids[col]
        not_global = ~(is_global[row] | is_global[col])
        sel = (row_seg == col_seg) & not_global
        ctx = np.stack([row[sel], col[sel]])
        sel = (row_seg != col_seg) & not_global
        inter = np.stack([row[sel], col[sel]])
        return ctx, inter

    # ----------------------- node features (Pallas) -------------------------
    def _node_pos_dist(self, X, segment_mask, segment_idx):
        N = X.shape[0]
        pos = (np.arange(N) - segment_idx[segment_mask - 1]).astype(np.float32)
        tile, padded = _plan_layout(N)
        slab = np.zeros((_NODE_IN_ROWS, padded), np.float32)
        slab[0, :N] = pos
        slab[1:5, :N] = X[:, :, 0].T
        slab[5:9, :N] = X[:, :, 1].T
        slab[9:13, :N] = X[:, :, 2].T
        out = _fm_pallas_call(_node_kernel, slab, _NODE_OUT_ROWS, tile,
                              flops_per_col=250, transc_per_col=70)
        return out[:, :N].T                        # [N, 64] = pos(16)|NC|CC|OC

    def _node_angle(self, X, segment_idx, segment_ids, eps=1e-6):
        N = X.shape[0]
        X3 = X[:, :3, :].reshape(3 * N, 3)
        dX = X3[1:] - X3[:-1]
        U = _np_normalize(dX)
        u2, u1, u0 = U[:-2], U[1:-1], U[2:]
        n2 = _np_normalize(np.cross(u2, u1))
        n1 = _np_normalize(np.cross(u1, u0))
        cosD = np.clip((n2 * n1).sum(-1), -1 + eps, 1 - eps)
        D = np.sign((u2 * n1).sum(-1)) * np.arccos(cosD)
        D = np.pad(D, (1, 2)).reshape(N, 3)
        dihedral = np.concatenate([np.cos(D), np.sin(D)], -1)
        cosA = np.clip((u2 * u1).sum(-1), -1 + eps, 1 - eps)
        A = np.pad(np.arccos(cosA), (1, 2)).reshape(N, 3)
        angle = np.concatenate([np.cos(A), np.sin(A)], -1)
        feats = np.concatenate([dihedral, angle], -1).astype(np.float32)
        for i in segment_idx:
            if i == 0:
                feats[i:i + 2] = 0
            else:
                feats[i - 1:i + 2] = 0
        if self.interface_only == 0:
            feats[segment_ids == self.AG_SEG] = 0
        return feats                               # [N, 12]

    def _node_direct(self, X, segment_idx, segment_ids):
        N = X.shape[0]
        Xca = X[:, 1, :]
        dX = Xca[1:] - Xca[:-1]
        U = _np_normalize(dX)
        u2, u1 = U[:-2], U[1:-1]
        n2 = _np_normalize(np.cross(u2, u1))
        o1 = _np_normalize(u2 - u1)
        O = np.stack([o1, n2, np.cross(o1, n2)], axis=1)          # [N-3, 3, 3]
        O = np.pad(O.reshape(N - 3, 9), ((1, 2), (0, 0))).reshape(N, 3, 3)
        for i in segment_idx:
            if i == 0:
                O[i:i + 2] = 0
            else:
                O[i - 2:i + 2] = 0
        if self.interface_only == 0:
            O[segment_ids == self.AG_SEG] = 0

        def rot(d):
            return _np_normalize(np.einsum("nij,nj->ni", O, d))

        direct = np.concatenate(
            [rot(X[:, 0] - X[:, 1]), rot(X[:, 2] - X[:, 1]), rot(X[:, 3] - X[:, 1])],
            -1,
        ).astype(np.float32)                       # [N, 9]
        return direct, O.reshape(N, 9).astype(np.float32)

    # ----------------------- edge features (single fused Pallas call) -------
    def _edge_features(self, edges_list, X, Oflat):
        counts = [int(e.shape[1]) for e in edges_list]
        E_tot = int(sum(counts))
        if E_tot == 0:
            return [jnp.zeros((0, _EDGE_OUT_ROWS), jnp.float32) for _ in edges_list]

        rows = np.concatenate([np.asarray(e[0], np.int64) for e in edges_list])
        cols_idx = np.concatenate([np.asarray(e[1], np.int64) for e in edges_list])
        etype = np.concatenate(
            [np.full(c, i, np.float32) for i, c in enumerate(counts)]
        )

        tile, padded = _plan_layout(E_tot)
        slab = np.zeros((_EDGE_IN_ROWS, padded), np.float32)
        slab[0, :E_tot] = etype
        slab[1, :E_tot] = (rows - cols_idx).astype(np.float32)
        Xr = X[rows]                               # [E, 4, 3]
        slab[2:6, :E_tot] = Xr[:, :, 0].T
        slab[6:10, :E_tot] = Xr[:, :, 1].T
        slab[10:14, :E_tot] = Xr[:, :, 2].T
        slab[14:17, :E_tot] = X[cols_idx, 1, :].T  # CA of the target node
        slab[17:26, :E_tot] = Oflat[rows].T
        slab[26:35, :E_tot] = Oflat[cols_idx].T

        out = _fm_pallas_call(_edge_kernel, slab, _EDGE_OUT_ROWS, tile,
                              flops_per_col=500, transc_per_col=95)
        feats = out[:, :E_tot].T                   # [E_tot, 104]

        res, off = [], 0
        for c in counts:
            res.append(feats[off:off + c])
            off += c
        return res

    # ----------------------- construct_edges / forward ----------------------
    def _construct_edges(self, X, S, batch_id):
        N = S.shape[0]
        lengths = np.bincount(batch_id)
        max_n = int(lengths.max())
        offs = np.concatenate([[0], np.cumsum(lengths)[:-1]]).astype(np.int64)
        gni = np.arange(N)
        gni2lni = gni - offs[batch_id]

        segment_ids, segment_mask, segment_idx = self._construct_segment_ids(S)

        same_bid = np.zeros((N, max_n), np.float32)
        same_bid[gni, lengths[batch_id] - 1] = 1
        same_bid = 1 - np.cumsum(same_bid, axis=-1)
        same_bid = np.concatenate(
            [np.ones((N, 1), np.float32), same_bid[:, :-1]], axis=-1)
        same_bid[gni, gni2lni] = 0
        row, col = np.nonzero(same_bid)
        col = col + offs[batch_id[row]]

        is_global = (S == self.BOA_IDX) | (S == self.BOH_IDX) | (S == self.BOL_IDX)
        row_g, col_g = is_global[row], is_global[col]
        not_global = ~(row_g | col_g)
        row_seg, col_seg = segment_ids[row], segment_ids[col]

        sel_ctx = (row_seg == col_seg) & not_global
        ctx_rball = self._radial_edges(
            X, np.stack([row[sel_ctx], col[sel_ctx]], 1), 8.0)
        ctx_knn, inter_knn = self._knn_edges(X, offs, segment_ids, is_global, top_k=8)

        diff = row.astype(np.int64) - col.astype(np.int64)

        def seq_sel(d):
            base = (np.abs(diff) == d) & sel_ctx
            if self.interface_only == 0:
                base = base & (row_seg != self.AG_SEG)
            return base

        s1 = seq_sel(1)
        ctx_seq_d1 = np.stack([row[s1], col[s1]])
        s2 = seq_sel(2)
        ctx_seq_d2 = np.stack([row[s2], col[s2]])

        sel_inter = (row_seg != col_seg) & not_global
        inter_rball = self._radial_edges(
            X, np.stack([row[sel_inter], col[sel_inter]], 1), 12.0)
        sel_gn = (row_seg == col_seg) & (~not_global)
        global_normal = np.stack([row[sel_gn], col[sel_gn]])
        sel_gg = row_g & col_g
        global_global = np.stack([row[sel_gg], col[sel_gg]])

        # ---- node features ----
        pos_dis = self._node_pos_dist(X, segment_mask, segment_idx)        # Pallas
        angle = self._node_angle(X, segment_idx.tolist(), segment_ids)
        direct, Oflat = self._node_direct(X, segment_idx.tolist(), segment_ids)
        node_feats = jnp.concatenate(
            [pos_dis, jnp.asarray(angle), jnp.asarray(direct)], axis=1
        )                                                                  # [N, 85]

        # ---- edge features (single fused Pallas call over all 8 types) ----
        edges_list = [
            ctx_rball, global_normal, global_global, ctx_seq_d1,
            ctx_knn, ctx_seq_d2, inter_rball, inter_knn,
        ]
        edge_feats_list = self._edge_features(edges_list, X, Oflat)        # Pallas
        return edges_list, edge_feats_list, node_feats, segment_idx, segment_ids

    def forward(self, X, S, offsets):
        X = np.asarray(X, dtype=np.float32)
        S = np.asarray(S, dtype=np.int64)
        offsets = np.asarray(offsets, dtype=np.int64)
        batch_id = np.zeros_like(S)
        batch_id[offsets[1:-1]] = 1
        batch_id = np.cumsum(batch_id)
        return self._construct_edges(X, S, batch_id)


# ----------------------------------------------------------------------------
if __name__ == "__main__":
    key = jax.random.PRNGKey(0)

    # 2 "proteins": [BOA, 3 ag residues, BOH, 4 hc residues, BOL, 2 lc residues]
    per_batch_S = [1, 5, 5, 5, 2, 5, 5, 5, 5, 3, 5, 5]
    S = np.array(per_batch_S * 2, dtype=np.int64)
    N = S.shape[0]                                   # 24 residues total
    offsets = np.array([0, len(per_batch_S), N], dtype=np.int64)
    # backbone coordinates (N, CA, C, O) per residue
    X = np.asarray(jax.random.normal(key, (N, 4, 3), dtype=jnp.float32)) * 3.0

    model = ProteinFeaturePallas(interface_only=1)
    edges_list, edge_feats_list, node_feats, segment_idx, segment_ids = model.forward(
        X, S, offsets
    )

    node_feats = jax.block_until_ready(node_feats)
    edge_feats_list = [jax.block_until_ready(ef) for ef in edge_feats_list]

    assert node_feats.shape == (N, 85)
    assert bool(jnp.all(jnp.isfinite(node_feats)))
    for e, ef in zip(edges_list, edge_feats_list):
        assert ef.shape == (e.shape[1], 104)
        assert bool(jnp.all(jnp.isfinite(ef)))

    print("KERNEL_OK")
</pallas_src>

<mosaic_0001>
module attributes {stable_mosaic.version = 11 : i64} {
  func.func @_node_kernel(%arg0: i32, %arg1: memref<32x1xf32, #tpu.memory_space<vmem>>, %arg2: memref<16x128xf32, #tpu.memory_space<vmem>>, %arg3: memref<64x128xf32, #tpu.memory_space<vmem>>) attributes {dimension_semantics = [#tpu.dimension_semantics<parallel>], iteration_bounds = array<i64: 1>, scalar_prefetch = 0 : i64, scratch_operands = 0 : i64, tpu.core_type = #tpu.core_type<tc>, window_params = [{pipeline_mode = #tpu.pipeline_mode<synchronous>, transform_indices = @transform_0, window_bounds = array<i64: 32, 1>}, {transform_indices = @transform_1, window_bounds = array<i64: 16, 128>}, {transform_indices = @transform_2, window_bounds = array<i64: 64, 128>}]} {
    %c0 = arith.constant 0 : index
    %c0_0 = arith.constant 0 : index
    %0 = vector.load %arg1[%c0, %c0_0] : memref<32x1xf32, #tpu.memory_space<vmem>>, vector<8x1xf32>
    %c8 = arith.constant 8 : index
    %c0_1 = arith.constant 0 : index
    %1 = vector.load %arg1[%c8, %c0_1] : memref<32x1xf32, #tpu.memory_space<vmem>>, vector<16x1xf32>
    %c0_2 = arith.constant 0 : index
    %c0_3 = arith.constant 0 : index
    %2 = vector.load %arg2[%c0_2, %c0_3] : memref<16x128xf32, #tpu.memory_space<vmem>>, vector<1x128xf32>
    %3 = vector.broadcast %2 : vector<1x128xf32> to vector<8x128xf32>
    %4 = vector.broadcast %0 : vector<8x1xf32> to vector<8x128xf32>
    %5 = arith.mulf %3, %4 : vector<8x128xf32>
    %6 = math.cos %5 : vector<8x128xf32>
    %c0_4 = arith.constant 0 : index
    %c0_5 = arith.constant 0 : index
    %7 = vector.load %arg3[%c0_4, %c0_5] : memref<64x128xf32, #tpu.memory_space<vmem>>, vector<8x128xf32>
    tpu.vector_store %arg3[%c0_4, %c0_5], %6 {strides = array<i32>} : memref<64x128xf32, #tpu.memory_space<vmem>>, vector<8x128xf32>,
    %8 = math.sin %5 : vector<8x128xf32>
    %c8_6 = arith.constant 8 : index
    %c0_7 = arith.constant 0 : index
    %9 = vector.load %arg3[%c8_6, %c0_7] : memref<64x128xf32, #tpu.memory_space<vmem>>, vector<8x128xf32>
    tpu.vector_store %arg3[%c8_6, %c0_7], %8 {strides = array<i32>} : memref<64x128xf32, #tpu.memory_space<vmem>>, vector<8x128xf32>,
    %c1 = arith.constant 1 : index
    %c0_8 = arith.constant 0 : index
    %10 = vector.load %arg2[%c1, %c0_8] : memref<16x128xf32, #tpu.memory_space<vmem>>, vector<4x128xf32>
    %c2 = arith.constant 2 : index
    %c0_9 = arith.constant 0 : index
    %11 = vector.load %arg2[%c2, %c0_9] : memref<16x128xf32, #tpu.memory_space<vmem>>, vector<1x128xf32>
    %12 = vector.broadcast %11 : vector<1x128xf32> to vector<4x128xf32>
    %13 = arith.subf %10, %12 : vector<4x128xf32>
    %c5 = arith.constant 5 : index
    %c0_10 = arith.constant 0 : index
    %14 = vector.load %arg2[%c5, %c0_10] : memref<16x128xf32, #tpu.memory_space<vmem>>, vector<4x128xf32>
    %c6 = arith.constant 6 : index
    %c0_11 = arith.constant 0 : index
    %15 = vector.load %arg2[%c6, %c0_11] : memref<16x128xf32, #tpu.memory_space<vmem>>, vector<1x128xf32>
    %16 = vector.broadcast %15 : vector<1x128xf32> to vector<4x128xf32>
    %17 = arith.subf %14, %16 : vector<4x128xf32>
    %c9 = arith.constant 9 : index
    %c0_12 = arith.constant 0 : index
    %18 = vector.load %arg2[%c9, %c0_12] : memref<16x128xf32, #tpu.memory_space<vmem>>, vector<4x128xf32>
    %c10 = arith.constant 10 : index
    %c0_13 = arith.constant 0 : index
    %19 = vector.load %arg2[%c10, %c0_13] : memref<16x128xf32, #tpu.memory_space<vmem>>, vector<1x128xf32>
    %20 = vector.broadcast %19 : vector<1x128xf32> to vector<4x128xf32>
    %21 = arith.subf %18, %20 : vector<4x128xf32>
    %22 = arith.mulf %13, %13 : vector<4x128xf32>
    %23 = arith.mulf %17, %17 : vector<4x128xf32>
    %24 = arith.addf %22, %23 : vector<4x128xf32>
    %25 = arith.mulf %21, %21 : vector<4x128xf32>
    %26 = arith.addf %24, %25 : vector<4x128xf32>
    %cst = arith.constant 9.99999997E-7 : f32
    %27 = vector.broadcast %cst : f32 to vector<4x128xf32>
    %28 = arith.addf %26, %27 : vector<4x128xf32>
    %29 = math.sqrt %28 : vector<4x128xf32>
    %30 = vector.extract_strided_slice %29 {offsets = [0, 0], sizes = [1, 128], strides = [1, 1]} : vector<4x128xf32> to vector<1x128xf32>
    %31 = vector.broadcast %30 : vector<1x128xf32> to vector<16x128xf32>
    %32 = vector.broadcast %1 : vector<16x1xf32> to vector<16x128xf32>
    %33 = arith.subf %31, %32 : vector<16x128xf32>
    %cst_14 = arith.constant 8.000000e-01 : f32
    %34 = vector.broadcast %cst_14 : f32 to vector<16x128xf32>
    %35 = arith.mulf %33, %34 : vector<16x128xf32>
    %36 = arith.mulf %35, %35 : vector<16x128xf32>
    %cst_15 = arith.constant 0.000000e+00 : f32
    %37 = vector.broadcast %cst_15 : f32 to vector<16x128xf32>
    %38 = arith.subf %37, %36 : vector<16x128xf32>
    %39 = math.exp %38 : vector<16x128xf32>
    %c16 = arith.constant 16 : index
    %c0_16 = arith.constant 0 : index
    %40 = vector.load %arg3[%c16, %c0_16] : memref<64x128xf32, #tpu.memory_space<vmem>>, vector<16x128xf32>
    tpu.vector_store %arg3[%c16, %c0_16], %39 {strides = array<i32>} : memref<64x128xf32, #tpu.memory_space<vmem>>, vector<16x128xf32>,
    %41 = vector.extract_strided_slice %29 {offsets = [2, 0], sizes = [1, 128], strides = [1, 1]} : vector<4x128xf32> to vector<1x128xf32>
    %42 = vector.broadcast %41 : vector<1x128xf32> to vector<16x128xf32>
    %43 = vector.broadcast %1 : vector<16x1xf32> to vector<16x128xf32>
    %44 = arith.subf %42, %43 : vector<16x128xf32>
    %cst_17 = arith.constant 8.000000e-01 : f32
    %45 = vector.broadcast %cst_17 : f32 to vector<16x128xf32>
    %46 = arith.mulf %44, %45 : vector<16x128xf32>
    %47 = arith.mulf %46, %46 : vector<16x128xf32>
    %cst_18 = arith.constant 0.000000e+00 : f32
    %48 = vector.broadcast %cst_18 : f32 to vector<16x128xf32>
    %49 = arith.subf %48, %47 : vector<16x128xf32>
    %50 = math.exp %49 : vector<16x128xf32>
    %c32 = arith.constant 32 : index
    %c0_19 = arith.constant 0 : index
    %51 = vector.load %arg3[%c32, %c0_19] : memref<64x128xf32, #tpu.memory_space<vmem>>, vector<16x128xf32>
    tpu.vector_store %arg3[%c32, %c0_19], %50 {strides = array<i32>} : memref<64x128xf32, #tpu.memory_space<vmem>>, vector<16x128xf32>,
    %52 = vector.extract_strided_slice %29 {offsets = [3, 0], sizes = [1, 128], strides = [1, 1]} : vector<4x128xf32> to vector<1x128xf32>
    %53 = vector.broadcast %52 : vector<1x128xf32> to vector<16x128xf32>
    %54 = vector.broadcast %1 : vector<16x1xf32> to vector<16x128xf32>
    %55 = arith.subf %53, %54 : vector<16x128xf32>
    %cst_20 = arith.constant 8.000000e-01 : f32
    %56 = vector.broadcast %cst_20 : f32 to vector<16x128xf32>
    %57 = arith.mulf %55, %56 : vector<16x128xf32>
    %58 = arith.mulf %57, %57 : vector<16x128xf32>
    %cst_21 = arith.constant 0.000000e+00 : f32
    %59 = vector.broadcast %cst_21 : f32 to vector<16x128xf32>
    %60 = arith.subf %59, %58 : vector<16x128xf32>
    %61 = math.exp %60 : vector<16x128xf32>
    %c48 = arith.constant 48 : index
    %c0_22 = arith.constant 0 : index
    %62 = vector.load %arg3[%c48, %c0_22] : memref<64x128xf32, #tpu.memory_space<vmem>>, vector<16x128xf32>
    tpu.vector_store %arg3[%c48, %c0_22], %61 {strides = array<i32>} : memref<64x128xf32, #tpu.memory_space<vmem>>, vector<16x128xf32>,
    return
  }
  func.func @transform_0(%arg0: i32) -> (i32, i32) {
    %c0_i32 = arith.constant 0 : i32
    %c0_i32_0 = arith.constant 0 : i32
    %c0_i32_1 = arith.constant 0 : i32
    return %c0_i32, %c0_i32_0 : i32, i32
  }
  func.func @transform_1(%arg0: i32) -> (i32, i32) {
    %c0_i32 = arith.constant 0 : i32
    %c0_i32_0 = arith.constant 0 : i32
    return %c0_i32, %arg0 : i32, i32
  }
  func.func @transform_2(%arg0: i32) -> (i32, i32) {
    %c0_i32 = arith.constant 0 : i32
    %c0_i32_0 = arith.constant 0 : i32
    return %c0_i32, %arg0 : i32, i32
  }
}

</mosaic_0001>

<llo_original>
// kernel: tpu_custom_call.1
$region0: #{tpu_custom_call.1}
  #allocation0 [shape = 'u32[]', space=smem, size = 0x4, offset = 0x4, fixed_abs, tag = 'smem constant byte address 0x4 - core index']
  #allocation1 [shape = 'u32[144,128]{1,0:T(1,128)}', space=vmem, size = 0x12000, scoped, tag = 'internal scratch']
  %s0 = inlined_call_operand.vmem [shape: f32[32,1], index: 0, kind: input, shape index: {}]
  %s1 = inlined_call_operand.vmem [shape: f32[16,128], index: 1, kind: input, shape index: {}]
  %s2 = inlined_call_operand.hbm [shape: f32[64,128], index: 2, kind: output, shape index: {}]
  %s3 = sld [smem:[#allocation0]]
  $region18: #{tpu_custom_call.1} parent=0
    _
  %s5 = ssub.s32 1, %s3
  %s6 = scalar_select 0, %s5, %s3
  $region1: #{tpu_custom_call.1} parent=0
    #allocation2 [shape = 'u8[32768]{0}', space=vmem, size = 0x8000, scoped, tag = 'output window, operand 0, single buffered']
    #allocation3 [shape = 's32[1]{0}', space=sflag, size = 0x4, scoped, tag = 'scoped memory for tpu_custom_call.1']
    %7 = vsyncpa [#allocation3], 0
    // Predicated region
    $region2: #{tpu_custom_call.1} parent=1 // pred_check
      _
    $region3: #{tpu_custom_call.1} parent=1 // pred_check_branch
      %9 = sbr.rel (0) target = $region5
    $region4: #{tpu_custom_call.1} parent=1 // pred_region
      _
    $region5: #{tpu_custom_call.1} parent=1 // pred_fallthru
      _
    // Predicated region
    $region6: #{tpu_custom_call.1} parent=1 // pred_check
      _
    $region7: #{tpu_custom_call.1} parent=1 // pred_check_branch
      %11 = sbr.rel (0) target = $region9
    $region8: #{tpu_custom_call.1} parent=1 // pred_region
      _
    $region9: #{tpu_custom_call.1} parent=1 // pred_fallthru
      _
    %v12 = vld [vmem:[%s0] sm:$0xff]
    %v13 = vld [vmem:[%s0 + $0x8] sm:$0xff]
    %v14 = vld [vmem:[%s0 + $0x10] sm:$0xff]
    %v15 = vld [vmem:[%s1] sm:$0x1]
    %v16 = vlaneseq
    %v17 = vshrl.u32 %v16, 7
    %v18 = vsub.s32 0, %v17
    %v19 = vrot.slane %v15, %v18
    %21 = vset.pattern.permute.xlu0 0
    %22 = vperm.xlu0 %21, %v12
    %v23 = vpop.permute.xlu0 %22
    %v25 = vmul.f32 %v19, %v23
    %v26 = vand.u32 2147483647, %v25
    %vm27 = vcmp.le.f32.partialorder %v26, 0.7853982
    %vm28 = vcmp.lt.s32.totalorder %v25, 0
    %v29 = vand.u32 %v25, 2139095040
    %v30 = vshrl.u32 %v29, 23
    %v31 = vsub.s32 %v30, 127
    %v32 = vand.u32 2147483647, %v25
    %v33 = vand.u32 %v32, 8388607
    %v34 = vor.u32 %v33, 8388608
    %v35 = vsub.s32 0, %v34
    %v36 = vadd.s32 %v31, 1
    %vm37 = vcmp.gt.s32.totalorder %v36, 0
    %v38 = vsel %vm37, %v36, 0
    %v39 = vshrl.u32 %v38, 5
    %v40 = vand.u32 %v38, 31
    %v41 = vsub.s32 32, %v40
    %v42 = vshrl.u32 683565275, %v41
    %v43 = vshll.u32 683565275, %v40
    %v44 = vshrl.u32 2475754826, %v41
    %v45 = vor.u32 %v43, %v44
    %v46 = vshll.u32 2475754826, %v40
    %v47 = vshrl.u32 2131351028, %v41
    %v48 = vor.u32 %v46, %v47
    %v49 = vshll.u32 2131351028, %v40
    %v50 = vshrl.u32 2102212464, %v41
    %v51 = vor.u32 %v49, %v50
    %v52 = vshll.u32 2102212464, %v40
    %v53 = vshrl.u32 920167782, %v41
    %v54 = vor.u32 %v52, %v53
    %v55 = vshll.u32 920167782, %v40
    %v56 = vshrl.u32 1326507024, %v41
    %v57 = vor.u32 %v55, %v56
    %vm58 = vcmp.lt.s32.totalorder %v39, 1
    %vm59 = vcmp.lt.s32.totalorder %v39, 2
    %vm60 = vcmp.lt.s32.totalorder %v39, 3
    %vm61 = vcmp.lt.s32.totalorder %v39, 4
    %v62 = vsel %vm58, %v42, %v45
    %v63 = vsel %vm61, %v51, 2102212464
    %v64 = vsel %vm60, %v48, %v63
    %v65 = vsel %vm59, %v62, %v64
    %v66 = vsel %vm58, %v45, %v48
    %v67 = vsel %vm61, %v54, 920167782
    %v68 = vsel %vm60, %v51, %v67
    %v69 = vsel %vm59, %v66, %v68
    %v70 = vsel %vm58, %v48, %v51
    %v71 = vsel %vm61, %v57, 1326507024
    %v72 = vsel %vm60, %v54, %v71
    %v73 = vsel %vm59, %v70, %v72
    %v74 = vshll.u32 %v34, 8
    %v75 = vmul.u32.u64.compose %v74, %v73
    %v76 = vextract.low.u32 %v75
    %v77 = vextract.high.u32 %v75
    %v78 = vmul.u32.u64.compose %v74, %v69
    %v79 = vextract.low.u32 %v78
    %v80 = vextract.high.u32 %v78
    %v81 = vmul.u32 %v74, %v65
    %v82 = vadd.s32 %v77, %v79
    %vm83 = vc.u32 %v77, %v79
    %v84 = vadd.s32 %v80, 1
    %v85 = vsel %vm83, %v84, %v80
    %v86 = vadd.s32 %v81, %v85
    %v87 = vadd.s32 %v86, 536870912
    %v88 = vshrl.u32 %v87, 30
    %v89 = vshll.u32 %v88, 30
    %v90 = vsub.s32 %v86, %v89
    %vm91 = vcmp.lt.s32.totalorder %v90, 0
    %v92 = vsub.s32 0, %v90
    %v93 = vsel %vm91, %v92, %v90
    %v94 = vclz %v93
    %v95 = vsub.s32 %v94, 2
    %vm96 = vcmp.gt.s32.totalorder 0, %v95
    %v97 = vsel %vm96, 0, %v95
    %v98 = vsub.s32 32, %v97
    %v99 = vshll.u32 %v90, %v97
    %v100 = vshrl.u32 %v82, %v98
    %v101 = vor.u32 %v99, %v100
    %v102 = vsub.s32 4294967266, %v97
    %v103 = vadd.s32 %v102, 127
    %v104 = vshll.u32 %v103, 23
    %v105 = vor.u32 4788187, %v104
    %v106 = vand.u32 2147483647, %v105
    %v108 = vcvt.s32.f32 %v101
    %v109 = vmul.f32 %v108, %v106
    %v110 = vxor.u32 %v109, 2147483648
    %v111 = vsel %vm28, %v110, %v109
    %v112 = vsub.s32 4, %v88
    %v113 = vsel %vm28, %v112, %v88
    %v114 = vsel %vm27, %v25, %v111
    %v115 = vsel %vm27, 0, %v113
    %v116 = vcosq.f32.pop %v114
    %v117 = vsinq.f32.pop %v114
    %vm118 = vweird.f32 %v25
    %v119 = vand.u32 %v115, 3
    %vm120 = vcmp.lt.s32.totalorder %v119, 2
    %vm121 = vcmp.eq.s32.totalorder %v119, 0
    %v122 = vxor.u32 %v117, 2147483648
    %v123 = vsel %vm121, %v116, %v122
    %vm124 = vcmp.eq.s32.totalorder %v119, 2
    %v125 = vxor.u32 %v116, 2147483648
    %v126 = vsel %vm124, %v125, %v117
    %v127 = vsel %vm120, %v123, %v126
    %v128 = vsel %vm118, nan, %v127
    %129 = vst [vmem:[#allocation2] sm:$0xff] %v128
    %v130 = vand.u32 2147483647, %v25
    %vm131 = vcmp.le.f32.partialorder %v130, 0.7853982
    %vm132 = vcmp.lt.s32.totalorder %v25, 0
    %v133 = vand.u32 %v25, 2139095040
    %v134 = vshrl.u32 %v133, 23
    %v135 = vsub.s32 %v134, 127
    %v136 = vand.u32 2147483647, %v25
    %v137 = vand.u32 %v136, 8388607
    %v138 = vor.u32 %v137, 8388608
    %v139 = vsub.s32 0, %v138
    %v140 = vadd.s32 %v135, 1
    %vm141 = vcmp.gt.s32.totalorder %v140, 0
    %v142 = vsel %vm141, %v140, 0
    %v143 = vshrl.u32 %v142, 5
    %v144 = vand.u32 %v142, 31
    %v145 = vsub.s32 32, %v144
    %v146 = vshrl.u32 683565275, %v145
    %v147 = vshll.u32 683565275, %v144
    %v148 = vshrl.u32 2475754826, %v145
    %v149 = vor.u32 %v147, %v148
    %v150 = vshll.u32 2475754826, %v144
    %v151 = vshrl.u32 2131351028, %v145
    %v152 = vor.u32 %v150, %v151
    %v153 = vshll.u32 2131351028, %v144
    %v154 = vshrl.u32 2102212464, %v145
    %v155 = vor.u32 %v153, %v154
    %v156 = vshll.u32 2102212464, %v144
    %v157 = vshrl.u32 920167782, %v145
    %v158 = vor.u32 %v156, %v157
    %v159 = vshll.u32 920167782, %v144
    %v160 = vshrl.u32 1326507024, %v145
    %v161 = vor.u32 %v159, %v160
    %vm162 = vcmp.lt.s32.totalorder %v143, 1
    %vm163 = vcmp.lt.s32.totalorder %v143, 2
    %vm164 = vcmp.lt.s32.totalorder %v143, 3
    %vm165 = vcmp.lt.s32.totalorder %v143, 4
    %v166 = vsel %vm162, %v146, %v149
    %v167 = vsel %vm165, %v155, 2102212464
    %v168 = vsel %vm164, %v152, %v167
    %v169 = vsel %vm163, %v166, %v168
    %v170 = vsel %vm162, %v149, %v152
    %v171 = vsel %vm165, %v158, 920167782
    %v172 = vsel %vm164, %v155, %v171
    %v173 = vsel %vm163, %v170, %v172
    %v174 = vsel %vm162, %v152, %v155
    %v175 = vsel %vm165, %v161, 1326507024
    %v176 = vsel %vm164, %v158, %v175
    %v177 = vsel %vm163, %v174, %v176
    %v178 = vshll.u32 %v138, 8
    %v179 = vmul.u32.u64.compose %v178, %v177
    %v180 = vextract.low.u32 %v179
    %v181 = vextract.high.u32 %v179
    %v182 = vmul.u32.u64.compose %v178, %v173
    %v183 = vextract.low.u32 %v182
    %v184 = vextract.high.u32 %v182
    %v185 = vmul.u32 %v178, %v169
    %v186 = vadd.s32 %v181, %v183
    %vm187 = vc.u32 %v181, %v183
    %v188 = vadd.s32 %v184, 1
    %v189 = vsel %vm187, %v188, %v184
    %v190 = vadd.s32 %v185, %v189
    %v191 = vadd.s32 %v190, 536870912
    %v192 = vshrl.u32 %v191, 30
    %v193 = vshll.u32 %v192, 30
    %v194 = vsub.s32 %v190, %v193
    %vm195 = vcmp.lt.s32.totalorder %v194, 0
    %v196 = vsub.s32 0, %v194
    %v197 = vsel %vm195, %v196, %v194
    %v198 = vclz %v197
    %v199 = vsub.s32 %v198, 2
    %vm200 = vcmp.gt.s32.totalorder 0, %v199
    %v201 = vsel %vm200, 0, %v199
    %v202 = vsub.s32 32, %v201
    %v203 = vshll.u32 %v194, %v201
    %v204 = vshrl.u32 %v186, %v202
    %v205 = vor.u32 %v203, %v204
    %v206 = vsub.s32 4294967266, %v201
    %v207 = vadd.s32 %v206, 127
    %v208 = vshll.u32 %v207, 23
    %v209 = vor.u32 4788187, %v208
    %v210 = vand.u32 2147483647, %v209
    %v212 = vcvt.s32.f32 %v205
    %v213 = vmul.f32 %v212, %v210
    %v214 = vxor.u32 %v213, 2147483648
    %v215 = vsel %vm132, %v214, %v213
    %v216 = vsub.s32 4, %v192
    %v217 = vsel %vm132, %v216, %v192
    %v218 = vsel %vm131, %v25, %v215
    %v219 = vsel %vm131, 0, %v217
    %v220 = vcosq.f32.pop %v218
    %v221 = vsinq.f32.pop %v218
    %vm222 = vweird.f32 %v25
    %v223 = vadd.s32 %v219, 3
    %v224 = vand.u32 %v223, 3
    %vm225 = vcmp.lt.s32.totalorder %v224, 2
    %vm226 = vcmp.eq.s32.totalorder %v224, 0
    %v227 = vxor.u32 %v221, 2147483648
    %v228 = vsel %vm226, %v220, %v227
    %vm229 = vcmp.eq.s32.totalorder %v224, 2
    %v230 = vxor.u32 %v220, 2147483648
    %v231 = vsel %vm229, %v230, %v221
    %v232 = vsel %vm225, %v228, %v231
    %v233 = vsel %vm222, nan, %v232
    %234 = vst [vmem:[#allocation2 + $0x8] sm:$0xff] %v233
    %v235 = vld [vmem:[%s1 + $0x1] sm:$0xf]
    %v236 = vld [vmem:[%s1 + $0x2] sm:$0x1]
    %v237 = vlaneseq
    %v238 = vshrl.u32 %v237, 7
    %v239 = vsub.s32 0, %v238
    %v240 = vrot.slane %v236, %v239
    %v241 = vsub.f32 %v235, %v240
    %v242 = vld [vmem:[%s1 + $0x5] sm:$0xf]
    %v243 = vld [vmem:[%s1 + $0x6] sm:$0x1]
    %v244 = vlaneseq
    %v245 = vshrl.u32 %v244, 7
    %v246 = vsub.s32 0, %v245
    %v247 = vrot.slane %v243, %v246
    %v248 = vsub.f32 %v242, %v247
    %v249 = vld [vmem:[%s1 + $0x9] sm:$0xf]
    %v250 = vld [vmem:[%s1 + $0xa] sm:$0x1]
    %v251 = vlaneseq
    %v252 = vshrl.u32 %v251, 7
    %v253 = vsub.s32 0, %v252
    %v254 = vrot.slane %v250, %v253
    %v255 = vsub.f32 %v249, %v254
    %v256 = vmul.f32 %v241, %v241
    %v257 = vmul.f32 %v248, %v248
    %v258 = vadd.f32 %v256, %v257
    %v259 = vmul.f32 %v255, %v255
    %v260 = vadd.f32 %v258, %v259
    %v261 = vadd.f32 %v260, 1e-06
    %v262 = vrsqrt.pop %v261
    %v263 = vmul.f32 %v261, %v262
    %vm264 = vcmp.eq.f32.partialorder %v261, inf
    %v265 = vsel %vm264, %v261, %v263
    %vm266 = vcmp.eq.f32.partialorder %v261, 0.0
    %v267 = vand.u32 %v261, 2147483648
    %v268 = vsel %vm266, %v267, %v265
    %v269 = vlaneseq
    %v270 = vshrl.u32 %v269, 7
    %v271 = vsub.s32 0, %v270
    %v272 = vrot.slane %v268, %v271
    %274 = vset.pattern.permute.xlu0 0
    %275 = vperm.xlu0 %274, %v13
    %v276 = vpop.permute.xlu0 %275
    %279 = vset.pattern.permute.xlu0 0
    %280 = vperm.xlu0 %279, %v14
    %v281 = vpop.permute.xlu0 %280
    %v283 = vsub.f32 %v272, %v276
    %v284 = vsub.f32 %v272, %v281
    %v285 = vmul.f32 %v283, 0.8
    %v286 = vmul.f32 %v284, 0.8
    %v287 = vmul.f32 %v285, %v285
    %v288 = vmul.f32 %v286, %v286
    %v289 = vsub.f32 0.0, %v287
    %v290 = vsub.f32 0.0, %v288
    %v291 = vmul.f32 %v289, 1.442695
    %v292 = vpow.pop %v291
    %v293 = vmul.f32 %v290, 1.442695
    %v294 = vpow.pop %v293
    %295 = vst [vmem:[#allocation2 + $0x10] sm:$0xff] %v292
    %296 = vst [vmem:[#allocation2 + $0x18] sm:$0xff] %v294
    %v297 = vlaneseq
    %v298 = vshrl.u32 %v297, 7
    %v299 = vsub.s32 2, %v298
    %v300 = vrot.slane %v268, %v299
    %v301 = vsub.f32 %v300, %v276
    %v302 = vsub.f32 %v300, %v281
    %v303 = vmul.f32 %v301, 0.8
    %v304 = vmul.f32 %v302, 0.8
    %v305 = vmul.f32 %v303, %v303
    %v306 = vmul.f32 %v304, %v304
    %v307 = vsub.f32 0.0, %v305
    %v308 = vsub.f32 0.0, %v306
    %v309 = vmul.f32 %v307, 1.442695
    %v310 = vpow.pop %v309
    %v311 = vmul.f32 %v308, 1.442695
    %v312 = vpow.pop %v311
    %313 = vst [vmem:[#allocation2 + $0x20] sm:$0xff] %v310
    %314 = vst [vmem:[#allocation2 + $0x28] sm:$0xff] %v312
    %v315 = vlaneseq
    %v316 = vshrl.u32 %v315, 7
    %v317 = vsub.s32 3, %v316
    %v318 = vrot.slane %v268, %v317
    %v319 = vsub.f32 %v318, %v276
    %v320 = vsub.f32 %v318, %v281
    %v321 = vmul.f32 %v319, 0.8
    %v322 = vmul.f32 %v320, 0.8
    %v323 = vmul.f32 %v321, %v321
    %v324 = vmul.f32 %v322, %v322
    %v325 = vsub.f32 0.0, %v323
    %v326 = vsub.f32 0.0, %v324
    %v327 = vmul.f32 %v325, 1.442695
    %v328 = vpow.pop %v327
    %v329 = vmul.f32 %v326, 1.442695
    %v330 = vpow.pop %v329
    %331 = vst [vmem:[#allocation2 + $0x30] sm:$0xff] %v328
    %332 = vst [vmem:[#allocation2 + $0x38] sm:$0xff] %v330
    // Predicated region
    $region10: #{tpu_custom_call.1} parent=1 // pred_check
      _
    $region11: #{tpu_custom_call.1} parent=1 // pred_check_branch
      %334 = sbr.rel (0) target = $region13
    $region12: #{tpu_custom_call.1} parent=1 // pred_region
      %s336 = ssub.s32 1024, 1024
      %337 = vsyncadd [#allocation3], %s336
      %s338 = sshll.u32 [#allocation2], 4
      %s339 = int_to_ptr.vmem [resolvable:$true] %s338
      %344 = dma.vmem_to_hbm [thread:$0]  %s339, 1024, %s2, [#allocation3], 128, 128, 8
    $region13: #{tpu_custom_call.1} parent=1 // pred_fallthru
      _
    // Predicated region
    $region14: #{tpu_custom_call.1} parent=1 // pred_check
      _
    $region15: #{tpu_custom_call.1} parent=1 // pred_check_branch
      %346 = sbr.rel (0) target = $region17
    $region16: #{tpu_custom_call.1} parent=1 // pred_region
      %347 = dma.done [#allocation3], 1024
    $region17: #{tpu_custom_call.1} parent=1 // pred_fallthru
      _
    %348 = vsyncpa [#allocation3], 1

</llo_original>
